<compile_context>
chip_gen: v5e
topology: v5e:2x2
jax: 0.10.0
libtpu: 0.0.40
codegen_flags: <defaults>
</compile_context>

<pallas_src>
import functools

import jax
import jax.numpy as jnp
from jax.experimental import pallas as pl
from jax.experimental.pallas import tpu as pltpu


_LANE_TILE_MAX = 4096   # lanes per block (multiple of 128)
_ROW_TILE_MAX = 256     # rows per block (multiple of 8)
_ACC_W = 128            # lane width of each resident accumulator


def _round_up(x: int, m: int) -> int:
    return ((x + m - 1) // m) * m


def _maskdice_kernel(x_ref, t_ref, acc_ref, *, threshold: float,
                     length: int, lane_tile: int):
    """Accumulate per-row, lane-dense partial sums.

    Grid: (row_blocks [parallel], lane_blocks [arbitrary]).
    acc_ref block is (row_tile, 3*128) f32, resident across the lane axis:
      lanes [0,128)   : sum(inputs_masked * targets)   (intersection)
      lanes [128,256) : sum(inputs_masked)
      lanes [256,384) : sum(targets)
    """
    k = pl.program_id(1)
    n_lane_blocks = pl.num_programs(1)

    @pl.when(k == 0)
    def _():
        acc_ref[...] = jnp.zeros_like(acc_ref)

    thr = jnp.float32(threshold)
    nchunks = lane_tile // _ACC_W
    rem = length % lane_tile          # static; valid lanes in the LAST block

    def accumulate(mask_tail: bool):
        for j in range(nchunks):
            lo = j * _ACC_W
            if mask_tail and lo >= rem:
                break                 # fully out-of-range chunks contribute 0
            x = x_ref[:, pl.ds(lo, _ACC_W)].astype(jnp.float32)
            t = t_ref[:, pl.ds(lo, _ACC_W)].astype(jnp.float32)
            if mask_tail and lo + _ACC_W > rem:
                lane = jax.lax.broadcasted_iota(jnp.int32, x.shape, 1)
                valid = lane < (rem - lo)
                x = jnp.where(valid, x, 0.0)
                t = jnp.where(valid, t, 0.0)
            # inputs_act = (inputs > thr); inputs = inputs * inputs_act
            xm = jnp.where(x > thr, x, 0.0)
            acc_ref[:, 0:_ACC_W] += xm * t
            acc_ref[:, _ACC_W:2 * _ACC_W] += xm
            acc_ref[:, 2 * _ACC_W:3 * _ACC_W] += t

    if rem == 0:
        accumulate(False)
    else:
        @pl.when(k != n_lane_blocks - 1)
        def _():
            accumulate(False)

        @pl.when(k == n_lane_blocks - 1)
        def _():
            accumulate(True)


def mask_dice_loss(inputs: jax.Array, targets: jax.Array,
                   maskdice_threshold: float, *,
                   lane_tile: int | None = None,
                   row_tile: int | None = None) -> jax.Array:
    """Pallas implementation of MaskDiceLoss.forward. Returns a scalar f32."""
    assert inputs.shape == targets.shape and inputs.ndim == 2
    n, length = inputs.shape

    # ---- tile selection: big lane tiles (mem-bound); row tiles capped so the
    # "parallel" row axis keeps >= 2 blocks (both v7x TensorCores busy).
    if lane_tile is None:
        lane_tile = min(_round_up(length, 128), _LANE_TILE_MAX)
    if row_tile is None:
        n8 = _round_up(n, 8)
        row_tile = min(n8, _ROW_TILE_MAX)
        if n8 >= 16:
            row_tile = min(row_tile, max(8, (n8 // 2) // 8 * 8))
    assert lane_tile % 128 == 0 and row_tile % 8 == 0

    grid = (pl.cdiv(n, row_tile), pl.cdiv(length, lane_tile))

    kernel = functools.partial(
        _maskdice_kernel,
        threshold=float(maskdice_threshold),
        length=length,
        lane_tile=lane_tile)

    in_spec = pl.BlockSpec((row_tile, lane_tile), lambda i, k: (i, k))
    acc_spec = pl.BlockSpec((row_tile, 3 * _ACC_W), lambda i, k: (i, 0))

    acc = pl.pallas_call(
        kernel,
        out_shape=jax.ShapeDtypeStruct((n, 3 * _ACC_W), jnp.float32),
        grid_spec=pltpu.PrefetchScalarGridSpec(
            num_scalar_prefetch=0,
            grid=grid,
            in_specs=[in_spec, in_spec],
            out_specs=acc_spec,
        ),
        compiler_params=pltpu.CompilerParams(
            dimension_semantics=("parallel", "arbitrary"),
            vmem_limit_bytes=48 * 1024 * 1024,
        ),
    )(inputs, targets)

    # ---- finalize: 128 -> 1 reduce + dice + mean on the tiny (n, 384) array.
    smooth = jnp.float32(1e-8)
    inter = jnp.sum(acc[:, 0:_ACC_W], axis=1)
    x_sum = jnp.sum(acc[:, _ACC_W:2 * _ACC_W], axis=1)
    t_sum = jnp.sum(acc[:, 2 * _ACC_W:3 * _ACC_W], axis=1)
    dice = (2.0 * inter + smooth) / (x_sum + t_sum + smooth * jnp.float32(n))
    return jnp.float32(1.0) - jnp.mean(dice)


def _reference(inputs, targets, threshold):
    # Pure-JAX reference mirroring the PyTorch module.
    n = targets.shape[0]
    smooth = 1e-8
    act = (inputs > threshold).astype(inputs.dtype)
    x = inputs * act
    inter = x * targets
    dice = (2.0 * inter.sum(1) + smooth) / (x.sum(1) + targets.sum(1) + smooth * n)
    return 1.0 - dice.mean()


if __name__ == "__main__":
    key = jax.random.PRNGKey(0)
    k1, k2 = jax.random.split(key)

    # Small, module-consistent shapes: batch of 8 light curves, seq len 256.
    N, L = 8, 256
    threshold = 0.5
    inputs = jax.random.uniform(k1, (N, L), dtype=jnp.float32)
    targets = (jax.random.uniform(k2, (N, L)) > 0.5).astype(jnp.float32)

    loss = jax.block_until_ready(mask_dice_loss(inputs, targets, threshold))
    ref = _reference(inputs, targets, threshold)
    assert jnp.allclose(loss, ref, atol=1e-5, rtol=1e-5), (loss, ref)

    # Ragged path: odd N and L, forced small tiles -> multi-block grid with a
    # masked lane tail and a clipped last row block (no jnp.pad anywhere).
    N2, L2 = 20, 1000
    i2 = jax.random.uniform(jax.random.PRNGKey(1), (N2, L2), dtype=jnp.float32)
    t2 = (jax.random.uniform(jax.random.PRNGKey(2), (N2, L2)) > 0.5).astype(jnp.float32)
    loss2 = jax.block_until_ready(
        mask_dice_loss(i2, t2, 0.3, lane_tile=256, row_tile=8))
    ref2 = _reference(i2, t2, 0.3)
    assert jnp.allclose(loss2, ref2, atol=1e-5, rtol=1e-5), (loss2, ref2)

    # bf16 inputs/targets (half the HBM bytes); accumulation stays f32.
    N3, L3 = 16, 512
    i3 = jax.random.uniform(jax.random.PRNGKey(3), (N3, L3)).astype(jnp.bfloat16)
    t3 = (jax.random.uniform(jax.random.PRNGKey(4), (N3, L3)) > 0.5).astype(jnp.bfloat16)
    loss3 = jax.block_until_ready(mask_dice_loss(i3, t3, 0.5))
    ref3 = _reference(i3.astype(jnp.float32), t3.astype(jnp.float32), 0.5)
    assert jnp.allclose(loss3, ref3, atol=1e-4, rtol=1e-4), (loss3, ref3)

    print("KERNEL_OK")
</pallas_src>

<mosaic_0001>
module attributes {stable_mosaic.version = 11 : i64} {
  func.func @_maskdice_kernel(%arg0: i32, %arg1: i32, %arg2: memref<8x256xf32, #tpu.memory_space<vmem>>, %arg3: memref<8x256xf32, #tpu.memory_space<vmem>>, %arg4: memref<8x384xf32, #tpu.memory_space<vmem>>) attributes {dimension_semantics = [#tpu.dimension_semantics<parallel>, #tpu.dimension_semantics<arbitrary>], iteration_bounds = array<i64: 1, 1>, scalar_prefetch = 0 : i64, scratch_operands = 0 : i64, tpu.core_type = #tpu.core_type<tc>, window_params = [{transform_indices = @transform_0, window_bounds = array<i64: 8, 256>}, {transform_indices = @transform_1, window_bounds = array<i64: 8, 256>}, {transform_indices = @transform_2, window_bounds = array<i64: 8, 384>}]} {
    %c0_i32 = arith.constant 0 : i32
    %0 = arith.cmpi eq, %arg1, %c0_i32 : i32
    %1 = arith.extui %0 : i1 to i32
    %c0_i32_0 = arith.constant 0 : i32
    %2 = arith.cmpi ne, %1, %c0_i32_0 : i32
    scf.if %2 {
      %cst_33 = arith.constant 0.000000e+00 : f32
      %35 = vector.broadcast %cst_33 : f32 to vector<8x384xf32>
      %c0_34 = arith.constant 0 : index
      %c0_35 = arith.constant 0 : index
      %36 = vector.load %arg4[%c0_34, %c0_35] : memref<8x384xf32, #tpu.memory_space<vmem>>, vector<8x384xf32>
      tpu.vector_store %arg4[%c0_34, %c0_35], %35 {strides = array<i32>} : memref<8x384xf32, #tpu.memory_space<vmem>>, vector<8x384xf32>,
    } else {
    }
    %c0 = arith.constant 0 : index
    %c0_1 = arith.constant 0 : index
    %3 = vector.load %arg2[%c0, %c0_1] : memref<8x256xf32, #tpu.memory_space<vmem>>, vector<8x128xf32>
    %c0_2 = arith.constant 0 : index
    %c0_3 = arith.constant 0 : index
    %4 = vector.load %arg3[%c0_2, %c0_3] : memref<8x256xf32, #tpu.memory_space<vmem>>, vector<8x128xf32>
    %cst = arith.constant 5.000000e-01 : f32
    %5 = vector.broadcast %cst : f32 to vector<8x128xf32>
    %6 = arith.cmpf ogt, %3, %5 : vector<8x128xf32>
    %cst_4 = arith.constant 0.000000e+00 : f32
    %7 = vector.broadcast %cst_4 : f32 to vector<8x128xf32>
    %8 = arith.select %6, %3, %7 : vector<8x128xi1>, vector<8x128xf32>
    %c0_5 = arith.constant 0 : index
    %c0_6 = arith.constant 0 : index
    %9 = vector.load %arg4[%c0_5, %c0_6] : memref<8x384xf32, #tpu.memory_space<vmem>>, vector<8x128xf32>
    %10 = arith.mulf %8, %4 : vector<8x128xf32>
    %11 = arith.addf %9, %10 : vector<8x128xf32>
    %c0_7 = arith.constant 0 : index
    %c0_8 = arith.constant 0 : index
    %12 = vector.load %arg4[%c0_7, %c0_8] : memref<8x384xf32, #tpu.memory_space<vmem>>, vector<8x128xf32>
    tpu.vector_store %arg4[%c0_7, %c0_8], %11 {strides = array<i32>} : memref<8x384xf32, #tpu.memory_space<vmem>>, vector<8x128xf32>,
    %c0_9 = arith.constant 0 : index
    %c128 = arith.constant 128 : index
    %13 = vector.load %arg4[%c0_9, %c128] : memref<8x384xf32, #tpu.memory_space<vmem>>, vector<8x128xf32>
    %14 = arith.addf %13, %8 : vector<8x128xf32>
    %c0_10 = arith.constant 0 : index
    %c128_11 = arith.constant 128 : index
    %15 = vector.load %arg4[%c0_10, %c128_11] : memref<8x384xf32, #tpu.memory_space<vmem>>, vector<8x128xf32>
    tpu.vector_store %arg4[%c0_10, %c128_11], %14 {strides = array<i32>} : memref<8x384xf32, #tpu.memory_space<vmem>>, vector<8x128xf32>,
    %c0_12 = arith.constant 0 : index
    %c256 = arith.constant 256 : index
    %16 = vector.load %arg4[%c0_12, %c256] : memref<8x384xf32, #tpu.memory_space<vmem>>, vector<8x128xf32>
    %17 = arith.addf %16, %4 : vector<8x128xf32>
    %c0_13 = arith.constant 0 : index
    %c256_14 = arith.constant 256 : index
    %18 = vector.load %arg4[%c0_13, %c256_14] : memref<8x384xf32, #tpu.memory_space<vmem>>, vector<8x128xf32>
    tpu.vector_store %arg4[%c0_13, %c256_14], %17 {strides = array<i32>} : memref<8x384xf32, #tpu.memory_space<vmem>>, vector<8x128xf32>,
    %c0_15 = arith.constant 0 : index
    %c128_16 = arith.constant 128 : index
    %19 = vector.load %arg2[%c0_15, %c128_16] : memref<8x256xf32, #tpu.memory_space<vmem>>, vector<8x128xf32>
    %c0_17 = arith.constant 0 : index
    %c128_18 = arith.constant 128 : index
    %20 = vector.load %arg3[%c0_17, %c128_18] : memref<8x256xf32, #tpu.memory_space<vmem>>, vector<8x128xf32>
    %cst_19 = arith.constant 5.000000e-01 : f32
    %21 = vector.broadcast %cst_19 : f32 to vector<8x128xf32>
    %22 = arith.cmpf ogt, %19, %21 : vector<8x128xf32>
    %cst_20 = arith.constant 0.000000e+00 : f32
    %23 = vector.broadcast %cst_20 : f32 to vector<8x128xf32>
    %24 = arith.select %22, %19, %23 : vector<8x128xi1>, vector<8x128xf32>
    %c0_21 = arith.constant 0 : index
    %c0_22 = arith.constant 0 : index
    %25 = vector.load %arg4[%c0_21, %c0_22] : memref<8x384xf32, #tpu.memory_space<vmem>>, vector<8x128xf32>
    %26 = arith.mulf %24, %20 : vector<8x128xf32>
    %27 = arith.addf %25, %26 : vector<8x128xf32>
    %c0_23 = arith.constant 0 : index
    %c0_24 = arith.constant 0 : index
    %28 = vector.load %arg4[%c0_23, %c0_24] : memref<8x384xf32, #tpu.memory_space<vmem>>, vector<8x128xf32>
    tpu.vector_store %arg4[%c0_23, %c0_24], %27 {strides = array<i32>} : memref<8x384xf32, #tpu.memory_space<vmem>>, vector<8x128xf32>,
    %c0_25 = arith.constant 0 : index
    %c128_26 = arith.constant 128 : index
    %29 = vector.load %arg4[%c0_25, %c128_26] : memref<8x384xf32, #tpu.memory_space<vmem>>, vector<8x128xf32>
    %30 = arith.addf %29, %24 : vector<8x128xf32>
    %c0_27 = arith.constant 0 : index
    %c128_28 = arith.constant 128 : index
    %31 = vector.load %arg4[%c0_27, %c128_28] : memref<8x384xf32, #tpu.memory_space<vmem>>, vector<8x128xf32>
    tpu.vector_store %arg4[%c0_27, %c128_28], %30 {strides = array<i32>} : memref<8x384xf32, #tpu.memory_space<vmem>>, vector<8x128xf32>,
    %c0_29 = arith.constant 0 : index
    %c256_30 = arith.constant 256 : index
    %32 = vector.load %arg4[%c0_29, %c256_30] : memref<8x384xf32, #tpu.memory_space<vmem>>, vector<8x128xf32>
    %33 = arith.addf %32, %20 : vector<8x128xf32>
    %c0_31 = arith.constant 0 : index
    %c256_32 = arith.constant 256 : index
    %34 = vector.load %arg4[%c0_31, %c256_32] : memref<8x384xf32, #tpu.memory_space<vmem>>, vector<8x128xf32>
    tpu.vector_store %arg4[%c0_31, %c256_32], %33 {strides = array<i32>} : memref<8x384xf32, #tpu.memory_space<vmem>>, vector<8x128xf32>,
    return
  }
  func.func @transform_0(%arg0: i32, %arg1: i32) -> (i32, i32) {
    %c0_i32 = arith.constant 0 : i32
    return %arg0, %arg1 : i32, i32
  }
  func.func @transform_1(%arg0: i32, %arg1: i32) -> (i32, i32) {
    %c0_i32 = arith.constant 0 : i32
    return %arg0, %arg1 : i32, i32
  }
  func.func @transform_2(%arg0: i32, %arg1: i32) -> (i32, i32) {
    %c0_i32 = arith.constant 0 : i32
    %c0_i32_0 = arith.constant 0 : i32
    return %arg0, %c0_i32 : i32, i32
  }
}

</mosaic_0001>

<llo_original>
// kernel: tpu_custom_call.1
$region0: #{tpu_custom_call.1}
  #allocation0 [shape = 'u32[]', space=smem, size = 0x4, offset = 0x4, fixed_abs, tag = 'smem constant byte address 0x4 - core index']
  #allocation1 [shape = 'u32[72,128]{1,0:T(1,128)}', space=vmem, size = 0x9000, scoped, tag = 'internal scratch']
  %s0 = inlined_call_operand.hbm [shape: f32[8,256], index: 0, kind: input, shape index: {}]
  %s1 = inlined_call_operand.hbm [shape: f32[8,256], index: 1, kind: input, shape index: {}]
  %s2 = inlined_call_operand.hbm [shape: f32[8,384], index: 2, kind: output, shape index: {}]
  %s3 = sld [smem:[#allocation0]]
  $region30: #{tpu_custom_call.1} parent=0
    _
  %s5 = ssub.s32 1, %s3
  %s6 = scalar_select 0, %s5, %s3
  $region1: #{tpu_custom_call.1} parent=0
    #allocation2 [shape = 'u8[8192]{0}', space=vmem, size = 0x2000, scoped, tag = 'input window, operand 0, single buffered']
    #allocation3 [shape = 's32[1]{0}', space=sflag, size = 0x4, scoped, tag = 'scoped memory for tpu_custom_call.1']
    #allocation4 [shape = 's32[1]{0}', space=sflag, size = 0x4, scoped, tag = 'scoped memory for tpu_custom_call.1']
    #allocation5 [shape = 'u8[8192]{0}', space=vmem, size = 0x2000, scoped, tag = 'input window, operand 1, single buffered']
    #allocation6 [shape = 's32[1]{0}', space=sflag, size = 0x4, scoped, tag = 'scoped memory for tpu_custom_call.1']
    #allocation7 [shape = 'u8[12288]{0}', space=vmem, size = 0x3000, scoped, tag = 'output window, operand 0, single buffered']
    %7 = vsyncpa [#allocation3], 0
    %8 = vsyncpa [#allocation6], 0
    %9 = vsyncpa [#allocation4], 0
    // Predicated region
    $region2: #{tpu_custom_call.1} parent=1 // pred_check
      _
    $region3: #{tpu_custom_call.1} parent=1 // pred_check_branch
      %11 = sbr.rel (0) target = $region5
    $region4: #{tpu_custom_call.1} parent=1 // pred_region
      %13 = vsyncadd [#allocation3], 0
      %s15 = sshll.u32 %s0, 4
      %s16 = int_to_ptr.hbm [resolvable:$true] %s15
      %s17 = sshll.u32 [#allocation2], 4
      %s18 = int_to_ptr.vmem [resolvable:$true] %s17
      %20 = dma.hbm_to_vmem [thread:$0]  %s16, 256, %s18, [#allocation3]
    $region5: #{tpu_custom_call.1} parent=1 // pred_fallthru
      _
    // Predicated region
    $region6: #{tpu_custom_call.1} parent=1 // pred_check
      _
    $region7: #{tpu_custom_call.1} parent=1 // pred_check_branch
      %22 = sbr.rel (0) target = $region9
    $region8: #{tpu_custom_call.1} parent=1 // pred_region
      %24 = vsyncadd [#allocation6], 0
      %s26 = sshll.u32 %s1, 4
      %s27 = int_to_ptr.hbm [resolvable:$true] %s26
      %s28 = sshll.u32 [#allocation5], 4
      %s29 = int_to_ptr.vmem [resolvable:$true] %s28
      %31 = dma.hbm_to_vmem [thread:$0]  %s27, 256, %s29, [#allocation6]
    $region9: #{tpu_custom_call.1} parent=1 // pred_fallthru
      _
    // Predicated region
    $region10: #{tpu_custom_call.1} parent=1 // pred_check
      _
    $region11: #{tpu_custom_call.1} parent=1 // pred_check_branch
      %33 = sbr.rel (0) target = $region13
    $region12: #{tpu_custom_call.1} parent=1 // pred_region
      %35 = dma.done [#allocation3], 256
    $region13: #{tpu_custom_call.1} parent=1 // pred_fallthru
      _
    // Predicated region
    $region14: #{tpu_custom_call.1} parent=1 // pred_check
      _
    $region15: #{tpu_custom_call.1} parent=1 // pred_check_branch
      %37 = sbr.rel (0) target = $region17
    $region16: #{tpu_custom_call.1} parent=1 // pred_region
      %39 = dma.done [#allocation6], 256
    $region17: #{tpu_custom_call.1} parent=1 // pred_fallthru
      _
    %p40 = scmp.eq.s32.totalorder 0, 0
    // Predicated region
    $region18: #{tpu_custom_call.1} parent=1 // pred_check
      %p41 = pneg %p40
    $region19: #{tpu_custom_call.1} parent=1 // pred_check_branch
      %43 = sbr.rel (%p41) target = $region21
    $region20: #{tpu_custom_call.1} parent=1 // pred_region
      %44 = vst [vmem:[#allocation7] sm:$0xff] 0.0
      %45 = vst [vmem:[#allocation7 + $0x8] sm:$0xff] 0.0
      %46 = vst [vmem:[#allocation7 + $0x10] sm:$0xff] 0.0
    $region21: #{tpu_custom_call.1} parent=1 // pred_fallthru
      _
    %v47 = vld [vmem:[#allocation2] sm:$0xff]
    %v48 = vld [vmem:[#allocation5] sm:$0xff]
    %vm49 = vcmp.gt.f32.partialorder %v47, 0.5
    %v50 = vsel %vm49, %v47, 0.0
    %v51 = vld [vmem:[#allocation7] sm:$0xff]
    %v52 = vmul.f32 %v50, %v48
    %v53 = vadd.f32 %v51, %v52
    %54 = vst [vmem:[#allocation7] sm:$0xff] %v53
    %v55 = vld [vmem:[#allocation7 + $0x8] sm:$0xff]
    %v56 = vadd.f32 %v55, %v50
    %57 = vst [vmem:[#allocation7 + $0x8] sm:$0xff] %v56
    %v58 = vld [vmem:[#allocation7 + $0x10] sm:$0xff]
    %v59 = vadd.f32 %v58, %v48
    %60 = vst [vmem:[#allocation7 + $0x10] sm:$0xff] %v59
    %v61 = vld [vmem:[#allocation2 + $0x8] sm:$0xff]
    %v62 = vld [vmem:[#allocation5 + $0x8] sm:$0xff]
    %vm63 = vcmp.gt.f32.partialorder %v61, 0.5
    %v64 = vsel %vm63, %v61, 0.0
    %v65 = vld [vmem:[#allocation7] sm:$0xff]
    %v66 = vmul.f32 %v64, %v62
    %v67 = vadd.f32 %v65, %v66
    %68 = vst [vmem:[#allocation7] sm:$0xff] %v67
    %v69 = vld [vmem:[#allocation7 + $0x8] sm:$0xff]
    %v70 = vadd.f32 %v69, %v64
    %71 = vst [vmem:[#allocation7 + $0x8] sm:$0xff] %v70
    %v72 = vld [vmem:[#allocation7 + $0x10] sm:$0xff]
    %v73 = vadd.f32 %v72, %v62
    %74 = vst [vmem:[#allocation7 + $0x10] sm:$0xff] %v73
    // Predicated region
    $region22: #{tpu_custom_call.1} parent=1 // pred_check
      _
    $region23: #{tpu_custom_call.1} parent=1 // pred_check_branch
      %76 = sbr.rel (0) target = $region25
    $region24: #{tpu_custom_call.1} parent=1 // pred_region
      %78 = vsyncadd [#allocation4], 0
      %s80 = sshll.u32 [#allocation7], 4
      %s81 = int_to_ptr.vmem [resolvable:$true] %s80
      %s82 = sshll.u32 %s2, 4
      %s83 = int_to_ptr.hbm [resolvable:$true] %s82
      %85 = dma.vmem_to_hbm [thread:$0]  %s81, 384, %s83, [#allocation4]
    $region25: #{tpu_custom_call.1} parent=1 // pred_fallthru
      _
    // Predicated region
    $region26: #{tpu_custom_call.1} parent=1 // pred_check
      _
    $region27: #{tpu_custom_call.1} parent=1 // pred_check_branch
      %87 = sbr.rel (0) target = $region29
    $region28: #{tpu_custom_call.1} parent=1 // pred_region
      %89 = dma.done [#allocation4], 384
    $region29: #{tpu_custom_call.1} parent=1 // pred_fallthru
      _
    %90 = vsyncpa [#allocation3], 1
    %91 = vsyncpa [#allocation6], 1
    %92 = vsyncpa [#allocation4], 1

</llo_original>
